<compile_context>
chip_gen: v5e
topology: v5e:2x2
jax: 0.10.0
libtpu: 0.0.40
codegen_flags: <defaults>
</compile_context>

<pallas_src>
import jax
import jax.numpy as jnp
from jax import lax
from jax.experimental import pallas as pl
from jax.experimental.pallas import tpu as pltpu


def gated_action_kernel(x_ref, a_ref, w1_ref, b1_ref, w2_ref, b2_ref,
                        w3_ref, gate_tbl_ref, out_ref):
    tb = x_ref.shape[0]
    na = gate_tbl_ref.shape[0]

    # fc1 + relu: bf16 operands into the MXU, f32 accumulation, f32 elementwise.
    z1 = jnp.dot(x_ref[...].astype(jnp.bfloat16), w1_ref[...],
                 preferred_element_type=jnp.float32)
    x1 = jnp.maximum(z1 + b1_ref[...], 0.0)

    # fc2 + relu
    z2 = jnp.dot(x1.astype(jnp.bfloat16), w2_ref[...],
                 preferred_element_type=jnp.float32)
    x2 = jnp.maximum(z2 + b2_ref[...], 0.0)

    # Per-example gate select from the pre-activated (NA, H2) table.
    a_col = a_ref[...]                                        # (TB, 1) int32
    if na <= 8:
        # Unrolled VPU where-select chain: no MXU work, gates stay exact f32.
        g = gate_tbl_ref[pl.ds(0, 1), :]                      # (1, H2)
        for k in range(1, na):
            g = jnp.where(a_col == k, gate_tbl_ref[pl.ds(k, 1), :], g)
    else:
        # bf16 one-hot matmul (0/1 exact in bf16); avoids f32 multi-pass MXU.
        onehot = (a_col ==
                  lax.broadcasted_iota(jnp.int32, (tb, na), 1)).astype(jnp.bfloat16)
        g = jnp.dot(onehot, gate_tbl_ref[...].astype(jnp.bfloat16),
                    preferred_element_type=jnp.float32)       # (TB, H2)
    x2g = x2 * g

    # fc3 (no bias, out dim 1): contract the last dims so the result lands
    # directly in the (1, TB) lane-dense output layout (MXU has slack; this
    # frees the XLU reduce + relayout).
    out_ref[...] = lax.dot_general(
        w3_ref[...].astype(jnp.bfloat16), x2g.astype(jnp.bfloat16),
        (((1,), (1,)), ((), ())),
        preferred_element_type=jnp.float32)                   # (1, TB)


def _round_up(n, m):
    return ((n + m - 1) // m) * m


def gated_action_forward(x, a, params, *, gate_function="tanh", tb_max=2048):
    """x: (B, input_dims) float32, a: (B,) int action indices -> (B, 1) f32."""
    w1, b1, w2, b2, w3, action_gates, action_gates_bias = params
    B, input_dims = x.shape
    H1 = w1.shape[1]
    H2 = w2.shape[1]
    NA = action_gates.shape[0]

    # Batch tiling:
    #   * B <= 128 : a single full-array block (block == array dims is legal).
    #   * B  > 128 : tiles are multiples of 128 (unmasked lane-dense output
    #     stores) and, when possible, at least 2 tiles so the "parallel" batch
    #     axis can shard across both v7x TensorCores.
    if B <= 128:
        TB = _round_up(B, 8)
    else:
        TB = min(tb_max, _round_up(-(-B // 2), 128))
        TB = max(TB, 128)
    Bp = _round_up(B, TB)
    if Bp != B:
        x = jnp.pad(x, ((0, Bp - B), (0, 0)))
        a = jnp.pad(a.reshape(-1), (0, Bp - B))
    x = x.astype(jnp.float32)
    a_col = a.reshape(Bp, 1).astype(jnp.int32)
    nb = Bp // TB

    # bf16 weights for the MXU (halves weight DMA / VMEM footprint).
    w1_bf = w1.astype(jnp.bfloat16)
    w2_bf = w2.astype(jnp.bfloat16)
    b1_row = b1.reshape(1, H1).astype(jnp.float32)
    b2_row = b2.reshape(1, H2).astype(jnp.float32)
    w3_row = w3.reshape(1, H2).astype(jnp.float32)

    # Gate activation hoisted out of the kernel: one (NA, H2) table, f32.
    pre = action_gates.astype(jnp.float32) + action_gates_bias.reshape(1, H2).astype(jnp.float32)
    if gate_function == "tanh":
        gate_tbl = jnp.tanh(pre)
    elif gate_function == "sigmoid":
        gate_tbl = jax.nn.sigmoid(pre)
    else:
        # TODO(synk): 'noisy_relu' gate, return_activations, and the full=True
        # enumerate-all-actions branch are not implemented (tanh/sigmoid, full=False only).
        raise ValueError("gate_function must be 'tanh' or 'sigmoid'")

    resident = lambda i: (0, 0)          # weights / biases / gate table stay VMEM-resident

    in_specs = [
        pl.BlockSpec((TB, input_dims), lambda i: (i, 0)),   # x
        pl.BlockSpec((TB, 1), lambda i: (i, 0)),            # action indices
        pl.BlockSpec((input_dims, H1), resident),           # W1 (bf16)
        pl.BlockSpec((1, H1), resident),                    # b1
        pl.BlockSpec((H1, H2), resident),                   # W2 (bf16)
        pl.BlockSpec((1, H2), resident),                    # b2
        pl.BlockSpec((1, H2), resident),                    # W3 row
        pl.BlockSpec((NA, H2), resident),                   # activated gate table
    ]
    out_specs = pl.BlockSpec((1, TB), lambda i: (0, i))

    cost = pl.CostEstimate(
        flops=2 * Bp * (input_dims * H1 + H1 * H2 + H2) + Bp * NA * H2,
        transcendentals=0,
        bytes_accessed=(x.size * 4 + a_col.size * 4
                        + w1_bf.size * 2 + w2_bf.size * 2
                        + 4 * (b1_row.size + b2_row.size + w3_row.size + gate_tbl.size)
                        + Bp * 4),
    )

    out_row = pl.pallas_call(
        gated_action_kernel,
        out_shape=jax.ShapeDtypeStruct((1, Bp), jnp.float32),
        grid=(nb,),
        in_specs=in_specs,
        out_specs=out_specs,
        compiler_params=pltpu.CompilerParams(
            dimension_semantics=("parallel",)),   # v7x: shard batch over 2 TCs
        cost_estimate=cost,
    )(x, a_col, w1_bf, b1_row, w2_bf, b2_row, w3_row, gate_tbl)

    return out_row.reshape(Bp)[:B].reshape(B, 1)


def init_params(key, input_dims, h1_dims, h2_dims, num_actions):
    ks = jax.random.split(key, 7)
    # weights stored (in, out) == W^T of the PyTorch nn.Linear weight
    w1 = jax.random.normal(ks[0], (input_dims, h1_dims), jnp.float32) * 0.1
    b1 = jax.random.normal(ks[1], (h1_dims,), jnp.float32) * 0.1
    w2 = jax.random.normal(ks[2], (h1_dims, h2_dims), jnp.float32) * 0.1
    b2 = jax.random.normal(ks[3], (h2_dims,), jnp.float32) * 0.1
    w3 = jax.random.normal(ks[4], (h2_dims, 1), jnp.float32) * 0.1
    action_gates = jax.random.normal(ks[5], (num_actions, h2_dims), jnp.float32)
    action_gates_bias = jax.random.normal(ks[6], (h2_dims,), jnp.float32)
    return (w1, b1, w2, b2, w3, action_gates, action_gates_bias)


def reference_forward(x, a, params):
    w1, b1, w2, b2, w3, action_gates, action_gates_bias = params
    x1 = jnp.maximum(x @ w1 + b1, 0.0)
    x2 = jnp.maximum(x1 @ w2 + b2, 0.0)
    g = jnp.tanh(action_gates[a.reshape(-1)] + action_gates_bias)
    return (x2 * g) @ w3


if __name__ == "__main__":
    # small shapes consistent with the module's __init__
    B, input_dims, h1_dims, h2_dims, num_actions = 8, 32, 64, 64, 4

    key = jax.random.PRNGKey(0)
    kx, ka, kp = jax.random.split(key, 3)
    x = jax.random.normal(kx, (B, input_dims), jnp.float32)
    a = jax.random.randint(ka, (B,), 0, num_actions, jnp.int32)
    params = init_params(kp, input_dims, h1_dims, h2_dims, num_actions)

    out = gated_action_forward(x, a, params)
    out = jax.block_until_ready(out)

    ref = reference_forward(x, a, params)
    assert out.shape == (B, 1)
    # bf16 MXU operands (f32 accumulation) => compare to the f32 reference at a
    # correspondingly loose tolerance.
    assert jnp.allclose(out, ref, atol=2e-2, rtol=2e-2), "mismatch vs reference"

    print("KERNEL_OK")
</pallas_src>

<mosaic_0001>
module attributes {stable_mosaic.version = 11 : i64} {
  func.func @gated_action_kernel(%arg0: i32, %arg1: memref<8x32xf32, #tpu.memory_space<vmem>>, %arg2: memref<8x1xi32, #tpu.memory_space<vmem>>, %arg3: memref<32x64xbf16, #tpu.memory_space<vmem>>, %arg4: memref<1x64xf32, #tpu.memory_space<vmem>>, %arg5: memref<64x64xbf16, #tpu.memory_space<vmem>>, %arg6: memref<1x64xf32, #tpu.memory_space<vmem>>, %arg7: memref<1x64xf32, #tpu.memory_space<vmem>>, %arg8: memref<4x64xf32, #tpu.memory_space<vmem>>, %arg9: memref<1x8xf32, #tpu.memory_space<vmem>>) attributes {dimension_semantics = [#tpu.dimension_semantics<parallel>], iteration_bounds = array<i64: 1>, scalar_prefetch = 0 : i64, scratch_operands = 0 : i64, tpu.core_type = #tpu.core_type<tc>, window_params = [{transform_indices = @transform_0, window_bounds = array<i64: 8, 32>}, {transform_indices = @transform_1, window_bounds = array<i64: 8, 1>}, {pipeline_mode = #tpu.pipeline_mode<synchronous>, transform_indices = @transform_2, window_bounds = array<i64: 32, 64>}, {pipeline_mode = #tpu.pipeline_mode<synchronous>, transform_indices = @transform_3, window_bounds = array<i64: 1, 64>}, {pipeline_mode = #tpu.pipeline_mode<synchronous>, transform_indices = @transform_4, window_bounds = array<i64: 64, 64>}, {pipeline_mode = #tpu.pipeline_mode<synchronous>, transform_indices = @transform_5, window_bounds = array<i64: 1, 64>}, {pipeline_mode = #tpu.pipeline_mode<synchronous>, transform_indices = @transform_6, window_bounds = array<i64: 1, 64>}, {pipeline_mode = #tpu.pipeline_mode<synchronous>, transform_indices = @transform_7, window_bounds = array<i64: 4, 64>}, {transform_indices = @transform_8, window_bounds = array<i64: 1, 8>}]} {
    %c0 = arith.constant 0 : index
    %c0_0 = arith.constant 0 : index
    %0 = vector.load %arg1[%c0, %c0_0] : memref<8x32xf32, #tpu.memory_space<vmem>>, vector<8x32xf32>
    %1 = arith.truncf %0 : vector<8x32xf32> to vector<8x32xbf16>
    %c0_1 = arith.constant 0 : index
    %c0_2 = arith.constant 0 : index
    %2 = vector.load %arg3[%c0_1, %c0_2] : memref<32x64xbf16, #tpu.memory_space<vmem>>, vector<32x64xbf16>
    %cst = arith.constant dense<0.000000e+00> : vector<8x64xf32>
    %3 = tpu.matmul %1, %2, %cst {dimension_numbers = #tpu.dot_dimension_numbers<[1], [0], [0], [1], [0, 0, 1, 1], [], []>} : vector<8x32xbf16>, vector<32x64xbf16>, vector<8x64xf32> -> vector<8x64xf32>
    %c0_3 = arith.constant 0 : index
    %c0_4 = arith.constant 0 : index
    %4 = vector.load %arg4[%c0_3, %c0_4] : memref<1x64xf32, #tpu.memory_space<vmem>>, vector<1x64xf32>
    %5 = vector.broadcast %4 : vector<1x64xf32> to vector<8x64xf32>
    %6 = arith.addf %3, %5 : vector<8x64xf32>
    %cst_5 = arith.constant 0.000000e+00 : f32
    %7 = vector.broadcast %cst_5 : f32 to vector<8x64xf32>
    %8 = arith.maximumf %6, %7 : vector<8x64xf32>
    %9 = arith.truncf %8 : vector<8x64xf32> to vector<8x64xbf16>
    %c0_6 = arith.constant 0 : index
    %c0_7 = arith.constant 0 : index
    %10 = vector.load %arg5[%c0_6, %c0_7] : memref<64x64xbf16, #tpu.memory_space<vmem>>, vector<64x64xbf16>
    %cst_8 = arith.constant dense<0.000000e+00> : vector<8x64xf32>
    %11 = tpu.matmul %9, %10, %cst_8 {dimension_numbers = #tpu.dot_dimension_numbers<[1], [0], [0], [1], [0, 0, 1, 1], [], []>} : vector<8x64xbf16>, vector<64x64xbf16>, vector<8x64xf32> -> vector<8x64xf32>
    %c0_9 = arith.constant 0 : index
    %c0_10 = arith.constant 0 : index
    %12 = vector.load %arg6[%c0_9, %c0_10] : memref<1x64xf32, #tpu.memory_space<vmem>>, vector<1x64xf32>
    %13 = vector.broadcast %12 : vector<1x64xf32> to vector<8x64xf32>
    %14 = arith.addf %11, %13 : vector<8x64xf32>
    %cst_11 = arith.constant 0.000000e+00 : f32
    %15 = vector.broadcast %cst_11 : f32 to vector<8x64xf32>
    %16 = arith.maximumf %14, %15 : vector<8x64xf32>
    %c0_12 = arith.constant 0 : index
    %c0_13 = arith.constant 0 : index
    %17 = vector.load %arg2[%c0_12, %c0_13] : memref<8x1xi32, #tpu.memory_space<vmem>>, vector<8x1xi32>
    %c0_14 = arith.constant 0 : index
    %c0_15 = arith.constant 0 : index
    %18 = vector.load %arg8[%c0_14, %c0_15] : memref<4x64xf32, #tpu.memory_space<vmem>>, vector<1x64xf32>
    %c1_i32 = arith.constant 1 : i32
    %19 = vector.broadcast %c1_i32 : i32 to vector<8x1xi32>
    %20 = arith.cmpi eq, %17, %19 : vector<8x1xi32>
    %c1 = arith.constant 1 : index
    %c0_16 = arith.constant 0 : index
    %21 = vector.load %arg8[%c1, %c0_16] : memref<4x64xf32, #tpu.memory_space<vmem>>, vector<1x64xf32>
    %22 = vector.shape_cast %20 : vector<8x1xi1> to vector<8x1xi1>
    %23 = vector.broadcast %22 : vector<8x1xi1> to vector<8x64xi1>
    %24 = vector.shape_cast %21 : vector<1x64xf32> to vector<1x64xf32>
    %25 = vector.broadcast %24 : vector<1x64xf32> to vector<8x64xf32>
    %26 = vector.shape_cast %18 : vector<1x64xf32> to vector<1x64xf32>
    %27 = vector.broadcast %26 : vector<1x64xf32> to vector<8x64xf32>
    %28 = arith.select %23, %25, %27 : vector<8x64xi1>, vector<8x64xf32>
    %c2_i32 = arith.constant 2 : i32
    %29 = vector.broadcast %c2_i32 : i32 to vector<8x1xi32>
    %30 = arith.cmpi eq, %17, %29 : vector<8x1xi32>
    %c2 = arith.constant 2 : index
    %c0_17 = arith.constant 0 : index
    %31 = vector.load %arg8[%c2, %c0_17] : memref<4x64xf32, #tpu.memory_space<vmem>>, vector<1x64xf32>
    %32 = vector.shape_cast %30 : vector<8x1xi1> to vector<8x1xi1>
    %33 = vector.broadcast %32 : vector<8x1xi1> to vector<8x64xi1>
    %34 = vector.shape_cast %31 : vector<1x64xf32> to vector<1x64xf32>
    %35 = vector.broadcast %34 : vector<1x64xf32> to vector<8x64xf32>
    %36 = arith.select %33, %35, %28 : vector<8x64xi1>, vector<8x64xf32>
    %c3_i32 = arith.constant 3 : i32
    %37 = vector.broadcast %c3_i32 : i32 to vector<8x1xi32>
    %38 = arith.cmpi eq, %17, %37 : vector<8x1xi32>
    %c3 = arith.constant 3 : index
    %c0_18 = arith.constant 0 : index
    %39 = vector.load %arg8[%c3, %c0_18] : memref<4x64xf32, #tpu.memory_space<vmem>>, vector<1x64xf32>
    %40 = vector.shape_cast %38 : vector<8x1xi1> to vector<8x1xi1>
    %41 = vector.broadcast %40 : vector<8x1xi1> to vector<8x64xi1>
    %42 = vector.shape_cast %39 : vector<1x64xf32> to vector<1x64xf32>
    %43 = vector.broadcast %42 : vector<1x64xf32> to vector<8x64xf32>
    %44 = arith.select %41, %43, %36 : vector<8x64xi1>, vector<8x64xf32>
    %45 = arith.mulf %16, %44 : vector<8x64xf32>
    %c0_19 = arith.constant 0 : index
    %c0_20 = arith.constant 0 : index
    %46 = vector.load %arg7[%c0_19, %c0_20] : memref<1x64xf32, #tpu.memory_space<vmem>>, vector<1x64xf32>
    %47 = arith.truncf %46 : vector<1x64xf32> to vector<1x64xbf16>
    %48 = arith.truncf %45 : vector<8x64xf32> to vector<8x64xbf16>
    %cst_21 = arith.constant dense<0.000000e+00> : vector<1x8xf32>
    %49 = tpu.matmul %47, %48, %cst_21 {dimension_numbers = #tpu.dot_dimension_numbers<[1], [1], [0], [0], [0, 0, 1, 0], [], []>} : vector<1x64xbf16>, vector<8x64xbf16>, vector<1x8xf32> -> vector<1x8xf32>
    %c0_22 = arith.constant 0 : index
    %c0_23 = arith.constant 0 : index
    %50 = vector.load %arg9[%c0_22, %c0_23] : memref<1x8xf32, #tpu.memory_space<vmem>>, vector<1x8xf32>
    tpu.vector_store %arg9[%c0_22, %c0_23], %49 {strides = array<i32>} : memref<1x8xf32, #tpu.memory_space<vmem>>, vector<1x8xf32>,
    return
  }
  func.func @transform_0(%arg0: i32) -> (i32, i32) {
    %c0_i32 = arith.constant 0 : i32
    %c0_i32_0 = arith.constant 0 : i32
    return %arg0, %c0_i32 : i32, i32
  }
  func.func @transform_1(%arg0: i32) -> (i32, i32) {
    %c0_i32 = arith.constant 0 : i32
    %c0_i32_0 = arith.constant 0 : i32
    return %arg0, %c0_i32 : i32, i32
  }
  func.func @transform_2(%arg0: i32) -> (i32, i32) {
    %c0_i32 = arith.constant 0 : i32
    %c0_i32_0 = arith.constant 0 : i32
    %c0_i32_1 = arith.constant 0 : i32
    return %c0_i32, %c0_i32_0 : i32, i32
  }
  func.func @transform_3(%arg0: i32) -> (i32, i32) {
    %c0_i32 = arith.constant 0 : i32
    %c0_i32_0 = arith.constant 0 : i32
    %c0_i32_1 = arith.constant 0 : i32
    return %c0_i32, %c0_i32_0 : i32, i32
  }
  func.func @transform_4(%arg0: i32) -> (i32, i32) {
    %c0_i32 = arith.constant 0 : i32
    %c0_i32_0 = arith.constant 0 : i32
    %c0_i32_1 = arith.constant 0 : i32
    return %c0_i32, %c0_i32_0 : i32, i32
  }
  func.func @transform_5(%arg0: i32) -> (i32, i32) {
    %c0_i32 = arith.constant 0 : i32
    %c0_i32_0 = arith.constant 0 : i32
    %c0_i32_1 = arith.constant 0 : i32
    return %c0_i32, %c0_i32_0 : i32, i32
  }
  func.func @transform_6(%arg0: i32) -> (i32, i32) {
    %c0_i32 = arith.constant 0 : i32
    %c0_i32_0 = arith.constant 0 : i32
    %c0_i32_1 = arith.constant 0 : i32
    return %c0_i32, %c0_i32_0 : i32, i32
  }
  func.func @transform_7(%arg0: i32) -> (i32, i32) {
    %c0_i32 = arith.constant 0 : i32
    %c0_i32_0 = arith.constant 0 : i32
    %c0_i32_1 = arith.constant 0 : i32
    return %c0_i32, %c0_i32_0 : i32, i32
  }
  func.func @transform_8(%arg0: i32) -> (i32, i32) {
    %c0_i32 = arith.constant 0 : i32
    %c0_i32_0 = arith.constant 0 : i32
    return %c0_i32, %arg0 : i32, i32
  }
}

</mosaic_0001>

<llo_original>
// kernel: tpu_custom_call.1
$region0: #{tpu_custom_call.1}
  #allocation0 [shape = 'u32[]', space=smem, size = 0x4, offset = 0x4, fixed_abs, tag = 'smem constant byte address 0x4 - core index']
  #allocation1 [shape = 'u32[72,128]{1,0:T(1,128)}', space=vmem, size = 0x9000, scoped, tag = 'internal scratch']
  %s0 = inlined_call_operand.vmem [shape: f32[8,32], index: 0, kind: input, shape index: {}]
  %s1 = inlined_call_operand.vmem [shape: s32[8,1], index: 1, kind: input, shape index: {}]
  %s2 = inlined_call_operand.hbm [shape: bf16[32,64], index: 2, kind: input, shape index: {}]
  %s3 = inlined_call_operand.hbm [shape: f32[1,64], index: 3, kind: input, shape index: {}]
  %s4 = inlined_call_operand.hbm [shape: bf16[64,64], index: 4, kind: input, shape index: {}]
  %s5 = inlined_call_operand.vmem [shape: f32[1,64], index: 5, kind: input, shape index: {}]
  %s6 = inlined_call_operand.vmem [shape: f32[1,64], index: 6, kind: input, shape index: {}]
  %s7 = inlined_call_operand.vmem [shape: f32[4,64], index: 7, kind: input, shape index: {}]
  %s8 = inlined_call_operand.hbm [shape: f32[1,8], index: 8, kind: output, shape index: {}]
  %s9 = sld [smem:[#allocation0]]
  $region54: #{tpu_custom_call.1} parent=0
    _
  %s11 = ssub.s32 1, %s9
  %s12 = scalar_select 0, %s11, %s9
  $region1: #{tpu_custom_call.1} parent=0
    #allocation2 [shape = 'u8[8192]{0}', space=vmem, size = 0x2000, scoped, tag = 'input window, operand 2, single buffered']
    #allocation3 [shape = 's32[1]{0}', space=sflag, size = 0x4, scoped, tag = 'scoped memory for tpu_custom_call.1']
    #allocation4 [shape = 's32[1]{0}', space=sflag, size = 0x4, scoped, tag = 'scoped memory for tpu_custom_call.1']
    #allocation5 [shape = 'u8[512]{0}', space=vmem, size = 0x400, scoped, tag = 'input window, operand 3, single buffered']
    #allocation6 [shape = 's32[1]{0}', space=sflag, size = 0x4, scoped, tag = 'scoped memory for tpu_custom_call.1']
    #allocation7 [shape = 'u8[16384]{0}', space=vmem, size = 0x4000, scoped, tag = 'input window, operand 4, single buffered']
    #allocation8 [shape = 'u8[512]{0}', space=vmem, size = 0x400, scoped, tag = 'output window, operand 0, single buffered']
    %13 = vsyncpa [#allocation3], 0
    %14 = vsyncpa [#allocation6], 0
    %15 = vsyncpa [#allocation4], 0
    // Predicated region
    $region2: #{tpu_custom_call.1} parent=1 // pred_check
      _
    $region3: #{tpu_custom_call.1} parent=1 // pred_check_branch
      %17 = sbr.rel (0) target = $region5
    $region4: #{tpu_custom_call.1} parent=1 // pred_region
      _
    $region5: #{tpu_custom_call.1} parent=1 // pred_fallthru
      _
    // Predicated region
    $region6: #{tpu_custom_call.1} parent=1 // pred_check
      _
    $region7: #{tpu_custom_call.1} parent=1 // pred_check_branch
      %19 = sbr.rel (0) target = $region9
    $region8: #{tpu_custom_call.1} parent=1 // pred_region
      _
    $region9: #{tpu_custom_call.1} parent=1 // pred_fallthru
      _
    // Predicated region
    $region10: #{tpu_custom_call.1} parent=1 // pred_check
      _
    $region11: #{tpu_custom_call.1} parent=1 // pred_check_branch
      %21 = sbr.rel (0) target = $region13
    $region12: #{tpu_custom_call.1} parent=1 // pred_region
      %23 = vsyncadd [#allocation3], 0
      %s24 = sshll.u32 %s2, 4
      %s25 = int_to_ptr.hbm [resolvable:$true] %s24
      %s26 = sshll.u32 [#allocation2], 4
      %s27 = int_to_ptr.vmem [resolvable:$true] %s26
      %32 = dma.hbm_to_vmem [thread:$0]  %s25, 256, %s27, [#allocation3], 64, 64, 4
    $region13: #{tpu_custom_call.1} parent=1 // pred_fallthru
      _
    // Predicated region
    $region14: #{tpu_custom_call.1} parent=1 // pred_check
      _
    $region15: #{tpu_custom_call.1} parent=1 // pred_check_branch
      %34 = sbr.rel (0) target = $region17
    $region16: #{tpu_custom_call.1} parent=1 // pred_region
      %36 = vsyncadd [#allocation6], 0
      %s38 = sshll.u32 %s3, 4
      %s39 = int_to_ptr.hbm [resolvable:$true] %s38
      %s40 = sshll.u32 [#allocation5], 4
      %s41 = int_to_ptr.vmem [resolvable:$true] %s40
      %43 = dma.hbm_to_vmem [thread:$0]  %s39, 16, %s41, [#allocation6]
    $region17: #{tpu_custom_call.1} parent=1 // pred_fallthru
      _
    // Predicated region
    $region18: #{tpu_custom_call.1} parent=1 // pred_check
      _
    $region19: #{tpu_custom_call.1} parent=1 // pred_check_branch
      %45 = sbr.rel (0) target = $region21
    $region20: #{tpu_custom_call.1} parent=1 // pred_region
      %47 = vsyncadd [#allocation6], 0
      %s48 = sshll.u32 %s4, 4
      %s49 = int_to_ptr.hbm [resolvable:$true] %s48
      %s50 = sshll.u32 [#allocation7], 4
      %s51 = int_to_ptr.vmem [resolvable:$true] %s50
      %56 = dma.hbm_to_vmem [thread:$0]  %s49, 512, %s51, [#allocation6], 64, 64, 4
    $region21: #{tpu_custom_call.1} parent=1 // pred_fallthru
      _
    // Predicated region
    $region22: #{tpu_custom_call.1} parent=1 // pred_check
      _
    $region23: #{tpu_custom_call.1} parent=1 // pred_check_branch
      %58 = sbr.rel (0) target = $region25
    $region24: #{tpu_custom_call.1} parent=1 // pred_region
      _
    $region25: #{tpu_custom_call.1} parent=1 // pred_fallthru
      _
    // Predicated region
    $region26: #{tpu_custom_call.1} parent=1 // pred_check
      _
    $region27: #{tpu_custom_call.1} parent=1 // pred_check_branch
      %60 = sbr.rel (0) target = $region29
    $region28: #{tpu_custom_call.1} parent=1 // pred_region
      _
    $region29: #{tpu_custom_call.1} parent=1 // pred_fallthru
      _
    // Predicated region
    $region30: #{tpu_custom_call.1} parent=1 // pred_check
      _
    $region31: #{tpu_custom_call.1} parent=1 // pred_check_branch
      %62 = sbr.rel (0) target = $region33
    $region32: #{tpu_custom_call.1} parent=1 // pred_region
      _
    $region33: #{tpu_custom_call.1} parent=1 // pred_fallthru
      _
    // Predicated region
    $region34: #{tpu_custom_call.1} parent=1 // pred_check
      _
    $region35: #{tpu_custom_call.1} parent=1 // pred_check_branch
      %64 = sbr.rel (0) target = $region37
    $region36: #{tpu_custom_call.1} parent=1 // pred_region
      %66 = dma.done [#allocation3], 256
    $region37: #{tpu_custom_call.1} parent=1 // pred_fallthru
      _
    // Predicated region
    $region38: #{tpu_custom_call.1} parent=1 // pred_check
      _
    $region39: #{tpu_custom_call.1} parent=1 // pred_check_branch
      %68 = sbr.rel (0) target = $region41
    $region40: #{tpu_custom_call.1} parent=1 // pred_region
      %70 = dma.done [#allocation6], 16
    $region41: #{tpu_custom_call.1} parent=1 // pred_fallthru
      _
    // Predicated region
    $region42: #{tpu_custom_call.1} parent=1 // pred_check
      _
    $region43: #{tpu_custom_call.1} parent=1 // pred_check_branch
      %72 = sbr.rel (0) target = $region45
    $region44: #{tpu_custom_call.1} parent=1 // pred_region
      %74 = dma.done [#allocation6], 512
    $region45: #{tpu_custom_call.1} parent=1 // pred_fallthru
      _
    %v76 = vld [vmem:[%s0] sm:$0xff]
    %v77 = vpack.c.bf16 %v76, %v76
    %v78 = vld [vmem:[#allocation2] sm:$0xf]
    %v79 = vld [vmem:[#allocation2 + $0x4] sm:$0xf]
    %v80 = vld [vmem:[#allocation2 + $0x8] sm:$0xf]
    %v81 = vld [vmem:[#allocation2 + $0xc] sm:$0xf]
    %v82 = vld [vmem:[#allocation5] sm:$0x1]
    %v84 = vperm.slane %v82, 0
    %v90 = vunpack.c.l.b16 %v78
    %v91 = vunpack.c.l.b16 %v79
    %v92 = vunpack.c.l.b16 %v80
    %v93 = vunpack.c.l.b16 %v81
    %v94 = vpack.c.b16 %v91, %v90
    %v95 = vpack.c.b16 %v93, %v92
    %vm98 = vcmask 261120
    %v100 = vsel %vm98, %v77, 0
    %102 = vmatpush.bf16.msra.mxu0 0
    %103 = vmatpush.bf16.msra.mxu0 0
    %104 = vmatpush.bf16.msra.mxu0 0
    %105 = vmatpush.bf16.msra.mxu0 0
    %106 = vmatpush.bf16.msra.mxu0 0
    %107 = vmatpush.bf16.msra.mxu0 0
    %108 = vmatpush.bf16.msra.mxu0 %v95
    %109 = vmatpush.bf16.msra.mxu0 %v94
    %110 = vmatmul.bf16.gmra.mxu0 %v100
    %v111 = vpop.f32.mrf.mxu0
    %v112 = vadd.f32 %v84, %v111
    %v113 = vpop.f32.mrf.mxu0
    %114 = vdwg.mxu0
    %v115 = vmax.f32 %v112, 0.0
    %v116 = vpack.c.bf16 %v115, %v115
    %v117 = vld [vmem:[#allocation7] sm:$0xf]
    %v118 = vld [vmem:[#allocation7 + $0x4] sm:$0xf]
    %v119 = vld [vmem:[#allocation7 + $0x8] sm:$0xf]
    %v120 = vld [vmem:[#allocation7 + $0xc] sm:$0xf]
    %v121 = vld [vmem:[#allocation7 + $0x10] sm:$0xf]
    %v122 = vld [vmem:[#allocation7 + $0x14] sm:$0xf]
    %v123 = vld [vmem:[#allocation7 + $0x18] sm:$0xf]
    %v124 = vld [vmem:[#allocation7 + $0x1c] sm:$0xf]
    %v125 = vld [vmem:[%s5] sm:$0x1]
    %v127 = vperm.slane %v125, 0
    %v137 = vunpack.c.l.b16 %v117
    %v138 = vunpack.c.l.b16 %v118
    %v139 = vunpack.c.l.b16 %v119
    %v140 = vunpack.c.l.b16 %v120
    %v141 = vunpack.c.l.b16 %v121
    %v142 = vunpack.c.l.b16 %v122
    %v143 = vunpack.c.l.b16 %v123
    %v144 = vunpack.c.l.b16 %v124
    %v145 = vpack.c.b16 %v138, %v137
    %v146 = vpack.c.b16 %v140, %v139
    %v147 = vpack.c.b16 %v142, %v141
    %v148 = vpack.c.b16 %v144, %v143
    %vm153 = vcmask 523264
    %v155 = vsel %vm153, %v116, 0
    %157 = vmatpush.bf16.msra.mxu0 0
    %158 = vmatpush.bf16.msra.mxu0 0
    %159 = vmatpush.bf16.msra.mxu0 0
    %160 = vmatpush.bf16.msra.mxu0 0
    %161 = vmatpush.bf16.msra.mxu0 %v148
    %162 = vmatpush.bf16.msra.mxu0 %v147
    %163 = vmatpush.bf16.msra.mxu0 %v146
    %164 = vmatpush.bf16.msra.mxu0 %v145
    %165 = vmatmul.bf16.gmra.mxu0 %v155
    %v166 = vpop.f32.mrf.mxu0
    %v167 = vadd.f32 %v127, %v166
    %v168 = vpop.f32.mrf.mxu0
    %169 = vdwg.mxu0
    %v170 = vmax.f32 %v167, 0.0
    %v171 = vld [vmem:[%s1] sm:$0xff]
    %v172 = vld [vmem:[%s7] sm:$0x1]
    %vm173 = vcmp.eq.s32.totalorder %v171, 1
    %v174 = vld [vmem:[%s7 + $0x1] sm:$0x1]
    %v175 = vsel %vm173, 1, 0
    %176 = vset.pattern.permute.xlu0 0
    %177 = vperm.xlu0 %176, %v175
    %v178 = vpop.permute.xlu0 %177
    %vm179 = vcmp.eq.s32.totalorder %v178, 1
    %v180 = vperm.slane %v174, 0
    %v181 = vperm.slane %v172, 0
    %v182 = vsel %vm179, %v180, %v181
    %vm183 = vcmp.eq.s32.totalorder %v171, 2
    %v184 = vld [vmem:[%s7 + $0x2] sm:$0x1]
    %v185 = vsel %vm183, 1, 0
    %186 = vset.pattern.permute.xlu0 0
    %187 = vperm.xlu0 %186, %v185
    %v188 = vpop.permute.xlu0 %187
    %vm189 = vcmp.eq.s32.totalorder %v188, 1
    %v190 = vperm.slane %v184, 0
    %v191 = vsel %vm189, %v190, %v182
    %vm192 = vcmp.eq.s32.totalorder %v171, 3
    %v193 = vld [vmem:[%s7 + $0x3] sm:$0x1]
    %v194 = vsel %vm192, 1, 0
    %195 = vset.pattern.permute.xlu0 0
    %196 = vperm.xlu0 %195, %v194
    %v197 = vpop.permute.xlu0 %196
    %vm198 = vcmp.eq.s32.totalorder %v197, 1
    %v199 = vperm.slane %v193, 0
    %v200 = vsel %vm198, %v199, %v191
    %v201 = vmul.f32 %v170, %v200
    %v202 = vld [vmem:[%s6] sm:$0x1]
    %v203 = vpack.c.bf16 %v202, %v202
    %v204 = vpack.c.bf16 %v201, %v201
    %v206 = vsel %vm153, %v203, 0
    %v209 = vsel %vm153, %v204, 0
    %211 = vmatpush.bf16.xpose.msra.mxu0 0
    %212 = vmatpush.bf16.xpose.msra.mxu0 0
    %213 = vmatpush.bf16.xpose.msra.mxu0 0
    %214 = vmatpush.bf16.xpose.msra.mxu0 0
    %215 = vmatpush.bf16.xpose.msra.mxu0 0
    %216 = vmatpush.bf16.xpose.msra.mxu0 0
    %217 = vmatpush.bf16.xpose.msra.mxu0 0
    %218 = vmatpush.bf16.xpose.msra.mxu0 %v209
    %219 = vmatmul.bf16.gmra.mxu0 %v206
    %v220 = vpop.f32.mrf.mxu0
    %v221 = vadd.f32 0.0, %v220
    %v222 = vpop.f32.mrf.mxu0
    %223 = vdwg.mxu0
    %vm224 = vcmask 57344
    %225 = vst.msk [vmem:[#allocation8] sm:$0x1] %vm224, %v221
    // Predicated region
    $region46: #{tpu_custom_call.1} parent=1 // pred_check
      _
    $region47: #{tpu_custom_call.1} parent=1 // pred_check_branch
      %227 = sbr.rel (0) target = $region49
    $region48: #{tpu_custom_call.1} parent=1 // pred_region
      %229 = vsyncadd [#allocation4], 0
      %s231 = sshll.u32 [#allocation8], 4
      %s232 = int_to_ptr.vmem [resolvable:$true] %s231
      %s233 = sshll.u32 %s8, 4
      %s234 = int_to_ptr.hbm [resolvable:$true] %s233
      %236 = dma.vmem_to_hbm [thread:$0]  %s232, 16, %s234, [#allocation4]
    $region49: #{tpu_custom_call.1} parent=1 // pred_fallthru
      _
    // Predicated region
    $region50: #{tpu_custom_call.1} parent=1 // pred_check
      _
    $region51: #{tpu_custom_call.1} parent=1 // pred_check_branch
      %238 = sbr.rel (0) target = $region53
    $region52: #{tpu_custom_call.1} parent=1 // pred_region
      %240 = dma.done [#allocation4], 16
    $region53: #{tpu_custom_call.1} parent=1 // pred_fallthru
      _
    %241 = vsyncpa [#allocation3], 1
    %242 = vsyncpa [#allocation6], 1
    %243 = vsyncpa [#allocation4], 1

</llo_original>
